<compile_context>
chip_gen: v7x
topology: tpu7x:2x2x1
jax: 0.10.0
libtpu: 0.0.40
codegen_flags: <defaults>
</compile_context>

<pallas_src>
import functools

import jax
import jax.numpy as jnp
from jax.experimental import pallas as pl
from jax.experimental.pallas import tpu as pltpu

LN_EPS = 1e-5  # torch.nn.LayerNorm default


def _round_up(x, m):
    return ((x + m - 1) // m) * m


def _layernorm(x, gamma, beta):
    # One-pass statistics: mu = E[x], var = E[x^2] - mu^2 (biased, as torch).
    mu = jnp.mean(x, axis=-1, keepdims=True)
    var = jnp.maximum(jnp.mean(x * x, axis=-1, keepdims=True) - mu * mu, 0.0)
    return (x - mu) * jax.lax.rsqrt(var + LN_EPS) * gamma + beta


def critic_kernel(
    state_ref, action_ref,
    w1_ref, b1_ref, g1_ref, be1_ref,
    w2s_ref, w2a_ref, b2_ref, g2_ref, be2_ref,
    wq_ref, bq_ref,
    q_ref,
):
    x = state_ref[...]                      # [TB, D_in]
    a = action_ref[...]                     # [TB, A]

    # fc1 + LayerNorm + ReLU  (MXU matmul, f32 accumulate)
    h1 = jnp.dot(x, w1_ref[...], preferred_element_type=jnp.float32) + b1_ref[...]
    h1 = _layernorm(h1, g1_ref[...], be1_ref[...])
    h1 = jnp.maximum(h1, 0.0)

    # fc2 on cat([h1, action], 1) == h1 @ W2[:H1] + action @ W2[H1:]
    h2 = jnp.dot(h1, w2s_ref[...], preferred_element_type=jnp.float32) + b2_ref[...]
    num_actions = a.shape[-1]
    if num_actions <= 8:
        # Tiny K: rank-1 broadcast multiply-adds on the VPU instead of a
        # near-empty MXU pass (unrolled at trace time; num_actions is static).
        for j in range(num_actions):
            h2 = h2 + a[:, j:j + 1] * w2a_ref[j:j + 1, :]
    else:
        h2 = h2 + jnp.dot(a, w2a_ref[...], preferred_element_type=jnp.float32)
    h2 = _layernorm(h2, g2_ref[...], be2_ref[...])
    h2 = jnp.maximum(h2, 0.0)

    # Q head: N=1 matmul replaced by VPU multiply + XLU lane reduction.
    q = jnp.sum(h2 * wq_ref[...], axis=-1, keepdims=True) + bq_ref[...]   # [TB, 1]

    # Lane-dense store: broadcast across 128 lanes (unmasked vst, contiguous
    # DMA); wrapper slices column 0.
    q_ref[...] = jnp.broadcast_to(q, q_ref.shape).astype(q_ref.dtype)


@functools.partial(jax.jit, static_argnames=("block_batch",))
def critic_forward(state, action, params, *, block_batch=512):
    B, d_in = state.shape
    num_actions = action.shape[1]
    hidden1 = params["w1"].shape[1]
    hidden2 = params["w2s"].shape[1]

    tb = min(_round_up(block_batch, 8), _round_up(B, 8))
    grid = (pl.cdiv(B, tb),)

    def _batch_spec(width):
        return pl.BlockSpec((tb, width), lambda i: (i, 0))

    def _const_spec(arr):
        return pl.BlockSpec(arr.shape, lambda i: (0, 0))

    param_order = ("w1", "b1", "g1", "be1",
                   "w2s", "w2a", "b2", "g2", "be2",
                   "wq", "bq")
    args = (state, action) + tuple(params[k] for k in param_order)

    in_specs = [_batch_spec(d_in), _batch_spec(num_actions)]
    in_specs += [_const_spec(params[k]) for k in param_order]

    out_specs = pl.BlockSpec((tb, 128), lambda i: (i, 0))
    out_shape = jax.ShapeDtypeStruct((B, 128), jnp.float32)

    # Advisory cost hint for the XLA scheduler.
    flops = 2 * B * (d_in * hidden1 + (hidden1 + num_actions) * hidden2 + hidden2)
    transcendentals = 2 * B  # one rsqrt per LayerNorm per row
    param_bytes = sum(int(params[k].size) * 4 for k in param_order)
    bytes_accessed = 4 * B * (d_in + num_actions + 128) + param_bytes

    q_pad = pl.pallas_call(
        critic_kernel,
        out_shape=out_shape,
        grid=grid,
        in_specs=in_specs,
        out_specs=out_specs,
        compiler_params=pltpu.CompilerParams(
            dimension_semantics=("parallel",)),
        cost_estimate=pl.CostEstimate(
            flops=flops,
            transcendentals=transcendentals,
            bytes_accessed=bytes_accessed),
    )(*args)
    return q_pad[:, :1]


def init_critic_params(key, input_dims, num_actions, hidden1, hidden2,
                       init_w=0.003):
    """Deterministic parameter init mirroring Critic.__init__/init_weights.

    Weights are stored transposed ([in, out]) so the kernel computes x @ W;
    the Q weight is stored as a (1, hidden2) row for the VPU reduction.
    fanin_init uses fanin = weight.size(0) = out_features (as in the module);
    biases keep the torch-default uniform(+-1/sqrt(in_features)) since the
    module only re-initializes weights.
    """
    ks = jax.random.split(key, 8)
    f32 = jnp.float32

    def u(k, shape, bound):
        return jax.random.uniform(k, shape, f32, minval=-bound, maxval=bound)

    v1 = 1.0 / jnp.sqrt(hidden1)            # fanin_init(fc1.weight): size[0]=hidden1
    v2 = 1.0 / jnp.sqrt(hidden2)            # fanin_init(fc2.weight): size[0]=hidden2
    b1_bound = 1.0 / jnp.sqrt(input_dims)
    b2_bound = 1.0 / jnp.sqrt(hidden1 + num_actions)
    bq_bound = 1.0 / jnp.sqrt(hidden2)      # Q.bias keeps torch default

    w2_full = u(ks[2], (hidden1 + num_actions, hidden2), v2)

    params = {
        "w1": u(ks[0], (input_dims, hidden1), v1),
        "b1": u(ks[1], (1, hidden1), b1_bound),
        "g1": jnp.ones((1, hidden1), f32),           # LayerNorm weight
        "be1": jnp.zeros((1, hidden1), f32),         # LayerNorm bias
        "w2s": w2_full[:hidden1, :],                 # rows multiplying h1
        "w2a": w2_full[hidden1:, :],                 # rows multiplying action
        "b2": u(ks[3], (1, hidden2), b2_bound),
        "g2": jnp.ones((1, hidden2), f32),
        "be2": jnp.zeros((1, hidden2), f32),
        "wq": u(ks[4], (1, hidden2), init_w),        # Q weight as a row
        "bq": u(ks[5], (1, 1), bq_bound),
    }
    return params


def critic_reference(state, action, p):
    """Pure-JAX reference for correctness check."""
    h1 = state @ p["w1"] + p["b1"]
    h1 = _layernorm(h1, p["g1"], p["be1"])
    h1 = jnp.maximum(h1, 0.0)
    h2 = h1 @ p["w2s"] + action @ p["w2a"] + p["b2"]
    h2 = _layernorm(h2, p["g2"], p["be2"])
    h2 = jnp.maximum(h2, 0.0)
    return jnp.sum(h2 * p["wq"], axis=-1, keepdims=True) + p["bq"]


if __name__ == "__main__":
    # Small shapes consistent with the module's forward; B chosen so the batch
    # grid has >1 step (block_batch=32 -> grid of 2).
    B = 64
    INPUT_DIMS = 16
    NUM_ACTIONS = 4
    HIDDEN1 = 64
    HIDDEN2 = 32

    key = jax.random.PRNGKey(0)
    k_state, k_action, k_params = jax.random.split(key, 3)

    state = jax.random.normal(k_state, (B, INPUT_DIMS), jnp.float32)
    action = jax.random.normal(k_action, (B, NUM_ACTIONS), jnp.float32)
    params = init_critic_params(k_params, INPUT_DIMS, NUM_ACTIONS,
                                HIDDEN1, HIDDEN2)

    q = critic_forward(state, action, params, block_batch=32)
    q = jax.block_until_ready(q)

    q_ref = critic_reference(state, action, params)
    assert q.shape == (B, 1), q.shape
    assert jnp.allclose(q, q_ref, atol=1e-4, rtol=1e-4), (q, q_ref)

    print("KERNEL_OK")
</pallas_src>

<mosaic_0001>
module attributes {stable_mosaic.version = 11 : i64} {
  func.func @critic_kernel(%arg0: i32, %arg1: memref<32x16xf32, #tpu.memory_space<vmem>>, %arg2: memref<32x4xf32, #tpu.memory_space<vmem>>, %arg3: memref<16x64xf32, #tpu.memory_space<vmem>>, %arg4: memref<1x64xf32, #tpu.memory_space<vmem>>, %arg5: memref<1x64xf32, #tpu.memory_space<vmem>>, %arg6: memref<1x64xf32, #tpu.memory_space<vmem>>, %arg7: memref<64x32xf32, #tpu.memory_space<vmem>>, %arg8: memref<4x32xf32, #tpu.memory_space<vmem>>, %arg9: memref<1x32xf32, #tpu.memory_space<vmem>>, %arg10: memref<1x32xf32, #tpu.memory_space<vmem>>, %arg11: memref<1x32xf32, #tpu.memory_space<vmem>>, %arg12: memref<1x32xf32, #tpu.memory_space<vmem>>, %arg13: memref<1x1xf32, #tpu.memory_space<vmem>>, %arg14: memref<32x128xf32, #tpu.memory_space<vmem>>) attributes {dimension_semantics = [#tpu.dimension_semantics<parallel>], iteration_bounds = array<i64: 2>, scalar_prefetch = 0 : i64, scratch_operands = 0 : i64, tpu.core_type = #tpu.core_type<tc>, window_params = [{transform_indices = @transform_0, window_bounds = array<i64: 32, 16>}, {transform_indices = @transform_1, window_bounds = array<i64: 32, 4>}, {pipeline_mode = #tpu.pipeline_mode<synchronous>, transform_indices = @transform_2, window_bounds = array<i64: 16, 64>}, {pipeline_mode = #tpu.pipeline_mode<synchronous>, transform_indices = @transform_3, window_bounds = array<i64: 1, 64>}, {pipeline_mode = #tpu.pipeline_mode<synchronous>, transform_indices = @transform_4, window_bounds = array<i64: 1, 64>}, {pipeline_mode = #tpu.pipeline_mode<synchronous>, transform_indices = @transform_5, window_bounds = array<i64: 1, 64>}, {pipeline_mode = #tpu.pipeline_mode<synchronous>, transform_indices = @transform_6, window_bounds = array<i64: 64, 32>}, {pipeline_mode = #tpu.pipeline_mode<synchronous>, transform_indices = @transform_7, window_bounds = array<i64: 4, 32>}, {pipeline_mode = #tpu.pipeline_mode<synchronous>, transform_indices = @transform_8, window_bounds = array<i64: 1, 32>}, {pipeline_mode = #tpu.pipeline_mode<synchronous>, transform_indices = @transform_9, window_bounds = array<i64: 1, 32>}, {pipeline_mode = #tpu.pipeline_mode<synchronous>, transform_indices = @transform_10, window_bounds = array<i64: 1, 32>}, {pipeline_mode = #tpu.pipeline_mode<synchronous>, transform_indices = @transform_11, window_bounds = array<i64: 1, 32>}, {pipeline_mode = #tpu.pipeline_mode<synchronous>, transform_indices = @transform_12, window_bounds = array<i64: 1, 1>}, {transform_indices = @transform_13, window_bounds = array<i64: 32, 128>}]} {
    %c0 = arith.constant 0 : index
    %c0_0 = arith.constant 0 : index
    %0 = vector.load %arg1[%c0, %c0_0] : memref<32x16xf32, #tpu.memory_space<vmem>>, vector<32x16xf32>
    %c0_1 = arith.constant 0 : index
    %c0_2 = arith.constant 0 : index
    %1 = vector.load %arg2[%c0_1, %c0_2] : memref<32x4xf32, #tpu.memory_space<vmem>>, vector<32x4xf32>
    %c0_3 = arith.constant 0 : index
    %c0_4 = arith.constant 0 : index
    %2 = vector.load %arg3[%c0_3, %c0_4] : memref<16x64xf32, #tpu.memory_space<vmem>>, vector<16x64xf32>
    %cst = arith.constant dense<0.000000e+00> : vector<32x64xf32>
    %3 = tpu.matmul %0, %2, %cst {dimension_numbers = #tpu.dot_dimension_numbers<[1], [0], [0], [1], [0, 0, 1, 1], [], []>} : vector<32x16xf32>, vector<16x64xf32>, vector<32x64xf32> -> vector<32x64xf32>
    %c0_5 = arith.constant 0 : index
    %c0_6 = arith.constant 0 : index
    %4 = vector.load %arg4[%c0_5, %c0_6] : memref<1x64xf32, #tpu.memory_space<vmem>>, vector<1x64xf32>
    %5 = vector.broadcast %4 : vector<1x64xf32> to vector<32x64xf32>
    %6 = arith.addf %3, %5 : vector<32x64xf32>
    %c0_7 = arith.constant 0 : index
    %c0_8 = arith.constant 0 : index
    %7 = vector.load %arg5[%c0_7, %c0_8] : memref<1x64xf32, #tpu.memory_space<vmem>>, vector<1x64xf32>
    %c0_9 = arith.constant 0 : index
    %c0_10 = arith.constant 0 : index
    %8 = vector.load %arg6[%c0_9, %c0_10] : memref<1x64xf32, #tpu.memory_space<vmem>>, vector<1x64xf32>
    %cst_11 = arith.constant dense<0.000000e+00> : vector<32xf32>
    %9 = vector.multi_reduction <add>, %6, %cst_11 [1] : vector<32x64xf32> to vector<32xf32>
    %10 = vector.shape_cast %9 : vector<32xf32> to vector<32x1xf32>
    %cst_12 = arith.constant 6.400000e+01 : f32
    %11 = vector.broadcast %cst_12 : f32 to vector<32x1xf32>
    %12 = arith.divf %10, %11 : vector<32x1xf32>
    %13 = arith.mulf %6, %6 : vector<32x64xf32>
    %cst_13 = arith.constant dense<0.000000e+00> : vector<32xf32>
    %14 = vector.multi_reduction <add>, %13, %cst_13 [1] : vector<32x64xf32> to vector<32xf32>
    %15 = vector.shape_cast %14 : vector<32xf32> to vector<32x1xf32>
    %cst_14 = arith.constant 6.400000e+01 : f32
    %16 = vector.broadcast %cst_14 : f32 to vector<32x1xf32>
    %17 = arith.divf %15, %16 : vector<32x1xf32>
    %18 = arith.mulf %12, %12 : vector<32x1xf32>
    %19 = arith.subf %17, %18 : vector<32x1xf32>
    %cst_15 = arith.constant 0.000000e+00 : f32
    %20 = vector.broadcast %cst_15 : f32 to vector<32x1xf32>
    %21 = arith.maximumf %19, %20 : vector<32x1xf32>
    %22 = vector.broadcast %12 : vector<32x1xf32> to vector<32x64xf32>
    %23 = arith.subf %6, %22 : vector<32x64xf32>
    %cst_16 = arith.constant 9.99999974E-6 : f32
    %24 = vector.broadcast %cst_16 : f32 to vector<32x1xf32>
    %25 = arith.addf %21, %24 : vector<32x1xf32>
    %26 = math.rsqrt %25 : vector<32x1xf32>
    %27 = vector.broadcast %26 : vector<32x1xf32> to vector<32x64xf32>
    %28 = arith.mulf %23, %27 : vector<32x64xf32>
    %29 = vector.broadcast %7 : vector<1x64xf32> to vector<32x64xf32>
    %30 = arith.mulf %28, %29 : vector<32x64xf32>
    %31 = vector.broadcast %8 : vector<1x64xf32> to vector<32x64xf32>
    %32 = arith.addf %30, %31 : vector<32x64xf32>
    %cst_17 = arith.constant 0.000000e+00 : f32
    %33 = vector.broadcast %cst_17 : f32 to vector<32x64xf32>
    %34 = arith.maximumf %32, %33 : vector<32x64xf32>
    %c0_18 = arith.constant 0 : index
    %c0_19 = arith.constant 0 : index
    %35 = vector.load %arg7[%c0_18, %c0_19] : memref<64x32xf32, #tpu.memory_space<vmem>>, vector<64x32xf32>
    %cst_20 = arith.constant dense<0.000000e+00> : vector<32x32xf32>
    %36 = tpu.matmul %34, %35, %cst_20 {dimension_numbers = #tpu.dot_dimension_numbers<[1], [0], [0], [1], [0, 0, 1, 1], [], []>} : vector<32x64xf32>, vector<64x32xf32>, vector<32x32xf32> -> vector<32x32xf32>
    %c0_21 = arith.constant 0 : index
    %c0_22 = arith.constant 0 : index
    %37 = vector.load %arg9[%c0_21, %c0_22] : memref<1x32xf32, #tpu.memory_space<vmem>>, vector<1x32xf32>
    %38 = vector.broadcast %37 : vector<1x32xf32> to vector<32x32xf32>
    %39 = arith.addf %36, %38 : vector<32x32xf32>
    %40 = vector.extract_strided_slice %1 {offsets = [0, 0], sizes = [32, 1], strides = [1, 1]} : vector<32x4xf32> to vector<32x1xf32>
    %c0_23 = arith.constant 0 : index
    %c0_24 = arith.constant 0 : index
    %41 = vector.load %arg8[%c0_23, %c0_24] : memref<4x32xf32, #tpu.memory_space<vmem>>, vector<1x32xf32>
    %42 = vector.broadcast %40 : vector<32x1xf32> to vector<32x32xf32>
    %43 = vector.broadcast %41 : vector<1x32xf32> to vector<32x32xf32>
    %44 = arith.mulf %42, %43 : vector<32x32xf32>
    %45 = arith.addf %39, %44 : vector<32x32xf32>
    %46 = vector.extract_strided_slice %1 {offsets = [0, 1], sizes = [32, 1], strides = [1, 1]} : vector<32x4xf32> to vector<32x1xf32>
    %c1 = arith.constant 1 : index
    %c0_25 = arith.constant 0 : index
    %47 = vector.load %arg8[%c1, %c0_25] : memref<4x32xf32, #tpu.memory_space<vmem>>, vector<1x32xf32>
    %48 = vector.broadcast %46 : vector<32x1xf32> to vector<32x32xf32>
    %49 = vector.broadcast %47 : vector<1x32xf32> to vector<32x32xf32>
    %50 = arith.mulf %48, %49 : vector<32x32xf32>
    %51 = arith.addf %45, %50 : vector<32x32xf32>
    %52 = vector.extract_strided_slice %1 {offsets = [0, 2], sizes = [32, 1], strides = [1, 1]} : vector<32x4xf32> to vector<32x1xf32>
    %c2 = arith.constant 2 : index
    %c0_26 = arith.constant 0 : index
    %53 = vector.load %arg8[%c2, %c0_26] : memref<4x32xf32, #tpu.memory_space<vmem>>, vector<1x32xf32>
    %54 = vector.broadcast %52 : vector<32x1xf32> to vector<32x32xf32>
    %55 = vector.broadcast %53 : vector<1x32xf32> to vector<32x32xf32>
    %56 = arith.mulf %54, %55 : vector<32x32xf32>
    %57 = arith.addf %51, %56 : vector<32x32xf32>
    %58 = vector.extract_strided_slice %1 {offsets = [0, 3], sizes = [32, 1], strides = [1, 1]} : vector<32x4xf32> to vector<32x1xf32>
    %c3 = arith.constant 3 : index
    %c0_27 = arith.constant 0 : index
    %59 = vector.load %arg8[%c3, %c0_27] : memref<4x32xf32, #tpu.memory_space<vmem>>, vector<1x32xf32>
    %60 = vector.broadcast %58 : vector<32x1xf32> to vector<32x32xf32>
    %61 = vector.broadcast %59 : vector<1x32xf32> to vector<32x32xf32>
    %62 = arith.mulf %60, %61 : vector<32x32xf32>
    %63 = arith.addf %57, %62 : vector<32x32xf32>
    %c0_28 = arith.constant 0 : index
    %c0_29 = arith.constant 0 : index
    %64 = vector.load %arg10[%c0_28, %c0_29] : memref<1x32xf32, #tpu.memory_space<vmem>>, vector<1x32xf32>
    %c0_30 = arith.constant 0 : index
    %c0_31 = arith.constant 0 : index
    %65 = vector.load %arg11[%c0_30, %c0_31] : memref<1x32xf32, #tpu.memory_space<vmem>>, vector<1x32xf32>
    %cst_32 = arith.constant dense<0.000000e+00> : vector<32xf32>
    %66 = vector.multi_reduction <add>, %63, %cst_32 [1] : vector<32x32xf32> to vector<32xf32>
    %67 = vector.shape_cast %66 : vector<32xf32> to vector<32x1xf32>
    %cst_33 = arith.constant 3.200000e+01 : f32
    %68 = vector.broadcast %cst_33 : f32 to vector<32x1xf32>
    %69 = arith.divf %67, %68 : vector<32x1xf32>
    %70 = arith.mulf %63, %63 : vector<32x32xf32>
    %cst_34 = arith.constant dense<0.000000e+00> : vector<32xf32>
    %71 = vector.multi_reduction <add>, %70, %cst_34 [1] : vector<32x32xf32> to vector<32xf32>
    %72 = vector.shape_cast %71 : vector<32xf32> to vector<32x1xf32>
    %cst_35 = arith.constant 3.200000e+01 : f32
    %73 = vector.broadcast %cst_35 : f32 to vector<32x1xf32>
    %74 = arith.divf %72, %73 : vector<32x1xf32>
    %75 = arith.mulf %69, %69 : vector<32x1xf32>
    %76 = arith.subf %74, %75 : vector<32x1xf32>
    %cst_36 = arith.constant 0.000000e+00 : f32
    %77 = vector.broadcast %cst_36 : f32 to vector<32x1xf32>
    %78 = arith.maximumf %76, %77 : vector<32x1xf32>
    %79 = vector.broadcast %69 : vector<32x1xf32> to vector<32x32xf32>
    %80 = arith.subf %63, %79 : vector<32x32xf32>
    %cst_37 = arith.constant 9.99999974E-6 : f32
    %81 = vector.broadcast %cst_37 : f32 to vector<32x1xf32>
    %82 = arith.addf %78, %81 : vector<32x1xf32>
    %83 = math.rsqrt %82 : vector<32x1xf32>
    %84 = vector.broadcast %83 : vector<32x1xf32> to vector<32x32xf32>
    %85 = arith.mulf %80, %84 : vector<32x32xf32>
    %86 = vector.broadcast %64 : vector<1x32xf32> to vector<32x32xf32>
    %87 = arith.mulf %85, %86 : vector<32x32xf32>
    %88 = vector.broadcast %65 : vector<1x32xf32> to vector<32x32xf32>
    %89 = arith.addf %87, %88 : vector<32x32xf32>
    %cst_38 = arith.constant 0.000000e+00 : f32
    %90 = vector.broadcast %cst_38 : f32 to vector<32x32xf32>
    %91 = arith.maximumf %89, %90 : vector<32x32xf32>
    %c0_39 = arith.constant 0 : index
    %c0_40 = arith.constant 0 : index
    %92 = vector.load %arg12[%c0_39, %c0_40] : memref<1x32xf32, #tpu.memory_space<vmem>>, vector<1x32xf32>
    %93 = vector.broadcast %92 : vector<1x32xf32> to vector<32x32xf32>
    %94 = arith.mulf %91, %93 : vector<32x32xf32>
    %cst_41 = arith.constant dense<0.000000e+00> : vector<32xf32>
    %95 = vector.multi_reduction <add>, %94, %cst_41 [1] : vector<32x32xf32> to vector<32xf32>
    %96 = vector.shape_cast %95 : vector<32xf32> to vector<32x1xf32>
    %c0_42 = arith.constant 0 : index
    %c0_43 = arith.constant 0 : index
    %97 = vector.load %arg13[%c0_42, %c0_43] : memref<1x1xf32, #tpu.memory_space<vmem>>, vector<1x1xf32>
    %98 = vector.broadcast %97 : vector<1x1xf32> to vector<32x1xf32>
    %99 = arith.addf %96, %98 : vector<32x1xf32>
    %100 = vector.shape_cast %99 : vector<32x1xf32> to vector<32x1xf32>
    %101 = vector.broadcast %100 : vector<32x1xf32> to vector<32x128xf32>
    %c0_44 = arith.constant 0 : index
    %c0_45 = arith.constant 0 : index
    %102 = vector.load %arg14[%c0_44, %c0_45] : memref<32x128xf32, #tpu.memory_space<vmem>>, vector<32x128xf32>
    tpu.vector_store %arg14[%c0_44, %c0_45], %101 {strides = array<i32>} : memref<32x128xf32, #tpu.memory_space<vmem>>, vector<32x128xf32>,
    return
  }
  func.func @transform_0(%arg0: i32) -> (i32, i32) {
    %c0_i32 = arith.constant 0 : i32
    %c0_i32_0 = arith.constant 0 : i32
    return %arg0, %c0_i32 : i32, i32
  }
  func.func @transform_1(%arg0: i32) -> (i32, i32) {
    %c0_i32 = arith.constant 0 : i32
    %c0_i32_0 = arith.constant 0 : i32
    return %arg0, %c0_i32 : i32, i32
  }
  func.func @transform_2(%arg0: i32) -> (i32, i32) {
    %c0_i32 = arith.constant 0 : i32
    %c0_i32_0 = arith.constant 0 : i32
    %c0_i32_1 = arith.constant 0 : i32
    return %c0_i32, %c0_i32_0 : i32, i32
  }
  func.func @transform_3(%arg0: i32) -> (i32, i32) {
    %c0_i32 = arith.constant 0 : i32
    %c0_i32_0 = arith.constant 0 : i32
    %c0_i32_1 = arith.constant 0 : i32
    return %c0_i32, %c0_i32_0 : i32, i32
  }
  func.func @transform_4(%arg0: i32) -> (i32, i32) {
    %c0_i32 = arith.constant 0 : i32
    %c0_i32_0 = arith.constant 0 : i32
    %c0_i32_1 = arith.constant 0 : i32
    return %c0_i32, %c0_i32_0 : i32, i32
  }
  func.func @transform_5(%arg0: i32) -> (i32, i32) {
    %c0_i32 = arith.constant 0 : i32
    %c0_i32_0 = arith.constant 0 : i32
    %c0_i32_1 = arith.constant 0 : i32
    return %c0_i32, %c0_i32_0 : i32, i32
  }
  func.func @transform_6(%arg0: i32) -> (i32, i32) {
    %c0_i32 = arith.constant 0 : i32
    %c0_i32_0 = arith.constant 0 : i32
    %c0_i32_1 = arith.constant 0 : i32
    return %c0_i32, %c0_i32_0 : i32, i32
  }
  func.func @transform_7(%arg0: i32) -> (i32, i32) {
    %c0_i32 = arith.constant 0 : i32
    %c0_i32_0 = arith.constant 0 : i32
    %c0_i32_1 = arith.constant 0 : i32
    return %c0_i32, %c0_i32_0 : i32, i32
  }
  func.func @transform_8(%arg0: i32) -> (i32, i32) {
    %c0_i32 = arith.constant 0 : i32
    %c0_i32_0 = arith.constant 0 : i32
    %c0_i32_1 = arith.constant 0 : i32
    return %c0_i32, %c0_i32_0 : i32, i32
  }
  func.func @transform_9(%arg0: i32) -> (i32, i32) {
    %c0_i32 = arith.constant 0 : i32
    %c0_i32_0 = arith.constant 0 : i32
    %c0_i32_1 = arith.constant 0 : i32
    return %c0_i32, %c0_i32_0 : i32, i32
  }
  func.func @transform_10(%arg0: i32) -> (i32, i32) {
    %c0_i32 = arith.constant 0 : i32
    %c0_i32_0 = arith.constant 0 : i32
    %c0_i32_1 = arith.constant 0 : i32
    return %c0_i32, %c0_i32_0 : i32, i32
  }
  func.func @transform_11(%arg0: i32) -> (i32, i32) {
    %c0_i32 = arith.constant 0 : i32
    %c0_i32_0 = arith.constant 0 : i32
    %c0_i32_1 = arith.constant 0 : i32
    return %c0_i32, %c0_i32_0 : i32, i32
  }
  func.func @transform_12(%arg0: i32) -> (i32, i32) {
    %c0_i32 = arith.constant 0 : i32
    %c0_i32_0 = arith.constant 0 : i32
    %c0_i32_1 = arith.constant 0 : i32
    return %c0_i32, %c0_i32_0 : i32, i32
  }
  func.func @transform_13(%arg0: i32) -> (i32, i32) {
    %c0_i32 = arith.constant 0 : i32
    %c0_i32_0 = arith.constant 0 : i32
    return %arg0, %c0_i32 : i32, i32
  }
}

</mosaic_0001>

<llo_original>
// kernel: critic_forward.1
$region0: #{critic_forward.1}
  #allocation0 [shape = 'u32[]', space=smem, size = 0x4, offset = 0x4, fixed_abs, tag = 'smem constant byte address 0x4 - core index']
  #allocation1 [shape = 'u32[144,128]{1,0:T(1,128)}', space=vmem, size = 0x12000, scoped, tag = 'internal scratch']
  #allocation2 [shape = 'f32[1,1]{1,0:T(1,128)S(1)}', space=vmem, size = 0x200, scoped, tag = 'scoped memory for critic_forward.1']
  %s0 = inlined_call_operand.vmem [shape: f32[64,16], index: 0, kind: input, shape index: {}]
  %s1 = inlined_call_operand.vmem [shape: f32[64,4], index: 1, kind: input, shape index: {}]
  %s2 = inlined_call_operand.vmem [shape: f32[16,64], index: 2, kind: input, shape index: {}]
  %s3 = inlined_call_operand.vmem [shape: f32[1,64], index: 3, kind: input, shape index: {}]
  %s4 = inlined_call_operand.vmem [shape: f32[1,64], index: 4, kind: input, shape index: {}]
  %s5 = inlined_call_operand.vmem [shape: f32[1,64], index: 5, kind: input, shape index: {}]
  %s6 = inlined_call_operand.vmem [shape: f32[64,32], index: 6, kind: input, shape index: {}]
  %s7 = inlined_call_operand.vmem [shape: f32[4,32], index: 7, kind: input, shape index: {}]
  %s8 = inlined_call_operand.vmem [shape: f32[1,32], index: 8, kind: input, shape index: {}]
  %s9 = inlined_call_operand.vmem [shape: f32[1,32], index: 9, kind: input, shape index: {}]
  %s10 = inlined_call_operand.vmem [shape: f32[1,32], index: 10, kind: input, shape index: {}]
  %s11 = inlined_call_operand.vmem [shape: f32[1,32], index: 11, kind: input, shape index: {}]
  %s12 = inlined_call_operand.<no memory space> [shape: f32[1,1], index: 12, kind: input, shape index: {}]
  %s13 = inlined_call_operand.vmem [shape: f32[64,128], index: 13, kind: output, shape index: {}]
  %s14 = sld [smem:[#allocation0]]
  $region85: #{critic_forward.1} parent=0
    _
  %s16 = ssub.s32 1, %s14
  %s17 = scalar_select 0, %s16, %s14
  %v18 = vstv %s12
  %19 = vst [vmem:[#allocation2] sm:$0x1] %v18
  loop: start=0, step=1, limit=4
  $region2: #{critic_forward.1} parent=0 // loop_pre_header
    _
  $region3: #{critic_forward.1} parent=0 // loop_header
    %s21 = sphi 0, %s25
    %p22 = scmp.ge.s32.totalorder %s21, 4
    %s31 = sphi 0, %s33
    %s34 = sphi 0, %s31
    %s35 = sphi 0, %s34
    %s51 = sphi 0, %s35
    %s57 = sphi 0, %s59
    %s60 = sphi 0, %s57
    %s61 = sphi 0, %s60
    %s77 = sphi 0, %s61
    %s81 = sphi 0, %s81
    %s83 = sphi 0, %s81
    %s84 = sphi 0, %s83
    %s98 = sphi 0, %s84
    %s102 = sphi 0, %s102
    %s104 = sphi 0, %s102
    %s105 = sphi 0, %s104
    %s119 = sphi 0, %s105
    %s123 = sphi 0, %s123
    %s125 = sphi 0, %s123
    %s126 = sphi 0, %s125
    %s140 = sphi 0, %s126
    %s144 = sphi 0, %s144
    %s146 = sphi 0, %s144
    %s147 = sphi 0, %s146
    %s161 = sphi 0, %s147
    %s165 = sphi 0, %s165
    %s167 = sphi 0, %s165
    %s168 = sphi 0, %s167
    %s182 = sphi 0, %s168
    %s186 = sphi 0, %s186
    %s188 = sphi 0, %s186
    %s189 = sphi 0, %s188
    %s203 = sphi 0, %s189
    %s207 = sphi 0, %s207
    %s209 = sphi 0, %s207
    %s210 = sphi 0, %s209
    %s224 = sphi 0, %s210
    %s228 = sphi 0, %s228
    %s230 = sphi 0, %s228
    %s231 = sphi 0, %s230
    %s245 = sphi 0, %s231
    %s249 = sphi 0, %s249
    %s251 = sphi 0, %s249
    %s252 = sphi 0, %s251
    %s266 = sphi 0, %s252
    %s270 = sphi 0, %s270
    %s272 = sphi 0, %s270
    %s273 = sphi 0, %s272
    %s287 = sphi 0, %s273
    %s291 = sphi 0, %s291
    %s293 = sphi 0, %s291
    %s294 = sphi 0, %s293
    %s308 = sphi 0, %s294
    %s314 = sphi 0, %s316
    %s317 = sphi 0, %s314
    %s318 = sphi 0, %s317
    %s334 = sphi 0, %s318
  $region4: #{critic_forward.1} parent=0 // loop_header_branch
    %24 = sbr.rel (%p22) target = $region8
  $region5: #{critic_forward.1} parent=0 // loop_body
    %s26 = ssub.s32 %s21, 1
    %s27 = ssub.s32 %s21, 2
    %s28 = sadd.s32 %s21, 1
    %s29 = ssub.s32 %s21, %s28
    %p30 = scmp.eq.s32.totalorder %s29, 0
    %s32 = sadd.s32 %s31, 1
    %s33 = scalar_select %p30, %s31, %s32
    %p36 = pneg %p30
    %p37 = scmp.eq.s32.totalorder %s21, 1
    %p38 = por %p36, %p37
    %p39 = scmp.ne.s32.totalorder %s31, %s34
    %p40 = scmp.eq.s32.totalorder %s21, 0
    %p41 = por %p39, %p40
    %p42 = scmp.ne.s32.totalorder %s31, %s34
    %p43 = scmp.eq.s32.totalorder %s26, 1
    %p44 = por %p42, %p43
    %p45 = scmp.ne.s32.totalorder %s34, %s35
    %p46 = scmp.eq.s32.totalorder %s26, 0
    %p47 = por %p45, %p46
    %p48 = scmp.ne.s32.totalorder %s34, %s35
    %p49 = scmp.eq.s32.totalorder %s27, 1
    %p50 = por %p48, %p49
    %p52 = scmp.ne.s32.totalorder %s35, %s51
    %p53 = scmp.eq.s32.totalorder %s27, 0
    %p54 = por %p52, %p53
    %s55 = ssub.s32 %s21, %s28
    %p56 = scmp.eq.s32.totalorder %s55, 0
    %s58 = sadd.s32 %s57, 1
    %s59 = scalar_select %p56, %s57, %s58
    %p62 = pneg %p56
    %p63 = scmp.eq.s32.totalorder %s21, 1
    %p64 = por %p62, %p63
    %p65 = scmp.ne.s32.totalorder %s57, %s60
    %p66 = scmp.eq.s32.totalorder %s21, 0
    %p67 = por %p65, %p66
    %p68 = scmp.ne.s32.totalorder %s57, %s60
    %p69 = scmp.eq.s32.totalorder %s26, 1
    %p70 = por %p68, %p69
    %p71 = scmp.ne.s32.totalorder %s60, %s61
    %p72 = scmp.eq.s32.totalorder %s26, 0
    %p73 = por %p71, %p72
    %p74 = scmp.ne.s32.totalorder %s60, %s61
    %p75 = scmp.eq.s32.totalorder %s27, 1
    %p76 = por %p74, %p75
    %p78 = scmp.ne.s32.totalorder %s61, %s77
    %p79 = scmp.eq.s32.totalorder %s27, 0
    %p80 = por %p78, %p79
    %s82 = sadd.s32 %s81, 1
    %p85 = scmp.eq.s32.totalorder %s21, 1
    %p86 = scmp.ne.s32.totalorder %s81, %s83
    %p87 = scmp.eq.s32.totalorder %s21, 0
    %p88 = por %p86, %p87
    %p89 = scmp.ne.s32.totalorder %s81, %s83
    %p90 = scmp.eq.s32.totalorder %s26, 1
    %p91 = por %p89, %p90
    %p92 = scmp.ne.s32.totalorder %s83, %s84
    %p93 = scmp.eq.s32.totalorder %s26, 0
    %p94 = por %p92, %p93
    %p95 = scmp.ne.s32.totalorder %s83, %s84
    %p96 = scmp.eq.s32.totalorder %s27, 1
    %p97 = por %p95, %p96
    %p99 = scmp.ne.s32.totalorder %s84, %s98
    %p100 = scmp.eq.s32.totalorder %s27, 0
    %p101 = por %p99, %p100
    %s103 = sadd.s32 %s102, 1
    %p106 = scmp.eq.s32.totalorder %s21, 1
    %p107 = scmp.ne.s32.totalorder %s102, %s104
    %p108 = scmp.eq.s32.totalorder %s21, 0
    %p109 = por %p107, %p108
    %p110 = scmp.ne.s32.totalorder %s102, %s104
    %p111 = scmp.eq.s32.totalorder %s26, 1
    %p112 = por %p110, %p111
    %p113 = scmp.ne.s32.totalorder %s104, %s105
    %p114 = scmp.eq.s32.totalorder %s26, 0
    %p115 = por %p113, %p114
    %p116 = scmp.ne.s32.totalorder %s104, %s105
    %p117 = scmp.eq.s32.totalorder %s27, 1
    %p118 = por %p116, %p117
    %p120 = scmp.ne.s32.totalorder %s105, %s119
    %p121 = scmp.eq.s32.totalorder %s27, 0
    %p122 = por %p120, %p121
    %s124 = sadd.s32 %s123, 1
    %p127 = scmp.eq.s32.totalorder %s21, 1
    %p128 = scmp.ne.s32.totalorder %s123, %s125
    %p129 = scmp.eq.s32.totalorder %s21, 0
    %p130 = por %p128, %p129
    %p131 = scmp.ne.s32.totalorder %s123, %s125
    %p132 = scmp.eq.s32.totalorder %s26, 1
    %p133 = por %p131, %p132
    %p134 = scmp.ne.s32.totalorder %s125, %s126
    %p135 = scmp.eq.s32.totalorder %s26, 0
    %p136 = por %p134, %p135
    %p137 = scmp.ne.s32.totalorder %s125, %s126
    %p138 = scmp.eq.s32.totalorder %s27, 1
    %p139 = por %p137, %p138
    %p141 = scmp.ne.s32.totalorder %s126, %s140
    %p142 = scmp.eq.s32.totalorder %s27, 0
    %p143 = por %p141, %p142
    %s145 = sadd.s32 %s144, 1
    %p148 = scmp.eq.s32.totalorder %s21, 1
    %p149 = scmp.ne.s32.totalorder %s144, %s146
    %p150 = scmp.eq.s32.totalorder %s21, 0
    %p151 = por %p149, %p150
    %p152 = scmp.ne.s32.totalorder %s144, %s146
    %p153 = scmp.eq.s32.totalorder %s26, 1
    %p154 = por %p152, %p153
    %p155 = scmp.ne.s32.totalorder %s146, %s147
    %p156 = scmp.eq.s32.totalorder %s26, 0
    %p157 = por %p155, %p156
    %p158 = scmp.ne.s32.totalorder %s146, %s147
    %p159 = scmp.eq.s32.totalorder %s27, 1
    %p160 = por %p158, %p159
    %p162 = scmp.ne.s32.totalorder %s147, %s161
    %p163 = scmp.eq.s32.totalorder %s27, 0
    %p164 = por %p162, %p163
    %s166 = sadd.s32 %s165, 1
    %p169 = scmp.eq.s32.totalorder %s21, 1
    %p170 = scmp.ne.s32.totalorder %s165, %s167
    %p171 = scmp.eq.s32.totalorder %s21, 0
    %p172 = por %p170, %p171
    %p173 = scmp.ne.s32.totalorder %s165, %s167
    %p174 = scmp.eq.s32.totalorder %s26, 1
    %p175 = por %p173, %p174
    %p176 = scmp.ne.s32.totalorder %s167, %s168
    %p177 = scmp.eq.s32.totalorder %s26, 0
    %p178 = por %p176, %p177
    %p179 = scmp.ne.s32.totalorder %s167, %s168
    %p180 = scmp.eq.s32.totalorder %s27, 1
    %p181 = por %p179, %p180
    %p183 = scmp.ne.s32.totalorder %s168, %s182
    %p184 = scmp.eq.s32.totalorder %s27, 0
    %p185 = por %p183, %p184
    %s187 = sadd.s32 %s186, 1
    %p190 = scmp.eq.s32.totalorder %s21, 1
    %p191 = scmp.ne.s32.totalorder %s186, %s188
    %p192 = scmp.eq.s32.totalorder %s21, 0
    %p193 = por %p191, %p192
    %p194 = scmp.ne.s32.totalorder %s186, %s188
    %p195 = scmp.eq.s32.totalorder %s26, 1
    %p196 = por %p194, %p195
    %p197 = scmp.ne.s32.totalorder %s188, %s189
    %p198 = scmp.eq.s32.totalorder %s26, 0
    %p199 = por %p197, %p198
    %p200 = scmp.ne.s32.totalorder %s188, %s189
    %p201 = scmp.eq.s32.totalorder %s27, 1
    %p202 = por %p200, %p201
    %p204 = scmp.ne.s32.totalorder %s189, %s203
    %p205 = scmp.eq.s32.totalorder %s27, 0
    %p206 = por %p204, %p205
    %s208 = sadd.s32 %s207, 1
    %p211 = scmp.eq.s32.totalorder %s21, 1
    %p212 = scmp.ne.s32.totalorder %s207, %s209
    %p213 = scmp.eq.s32.totalorder %s21, 0
    %p214 = por %p212, %p213
    %p215 = scmp.ne.s32.totalorder %s207, %s209
    %p216 = scmp.eq.s32.totalorder %s26, 1
    %p217 = por %p215, %p216
    %p218 = scmp.ne.s32.totalorder %s209, %s210
    %p219 = scmp.eq.s32.totalorder %s26, 0
    %p220 = por %p218, %p219
    %p221 = scmp.ne.s32.totalorder %s209, %s210
    %p222 = scmp.eq.s32.totalorder %s27, 1
    %p223 = por %p221, %p222
    %p225 = scmp.ne.s32.totalorder %s210, %s224
    %p226 = scmp.eq.s32.totalorder %s27, 0
    %p227 = por %p225, %p226
    %s229 = sadd.s32 %s228, 1
    %p232 = scmp.eq.s32.totalorder %s21, 1
    %p233 = scmp.ne.s32.totalorder %s228, %s230
    %p234 = scmp.eq.s32.totalorder %s21, 0
    %p235 = por %p233, %p234
    %p236 = scmp.ne.s32.totalorder %s228, %s230
    %p237 = scmp.eq.s32.totalorder %s26, 1
    %p238 = por %p236, %p237
    %p239 = scmp.ne.s32.totalorder %s230, %s231
    %p240 = scmp.eq.s32.totalorder %s26, 0
    %p241 = por %p239, %p240
    %p242 = scmp.ne.s32.totalorder %s230, %s231
    %p243 = scmp.eq.s32.totalorder %s27, 1
    %p244 = por %p242, %p243
    %p246 = scmp.ne.s32.totalorder %s231, %s245
    %p247 = scmp.eq.s32.totalorder %s27, 0
    %p248 = por %p246, %p247
    %s250 = sadd.s32 %s249, 1
    %p253 = scmp.eq.s32.totalorder %s21, 1
    %p254 = scmp.ne.s32.totalorder %s249, %s251
    %p255 = scmp.eq.s32.totalorder %s21, 0
    %p256 = por %p254, %p255
    %p257 = scmp.ne.s32.totalorder %s249, %s251
    %p258 = scmp.eq.s32.totalorder %s26, 1
    %p259 = por %p257, %p258
    %p260 = scmp.ne.s32.totalorder %s251, %s252
    %p261 = scmp.eq.s32.totalorder %s26, 0
    %p262 = por %p260, %p261
    %p263 = scmp.ne.s32.totalorder %s251, %s252
    %p264 = scmp.eq.s32.totalorder %s27, 1
    %p265 = por %p263, %p264
    %p267 = scmp.ne.s32.totalorder %s252, %s266
    %p268 = scmp.eq.s32.totalorder %s27, 0
    %p269 = por %p267, %p268
    %s271 = sadd.s32 %s270, 1
    %p274 = scmp.eq.s32.totalorder %s21, 1
    %p275 = scmp.ne.s32.totalorder %s270, %s272
    %p276 = scmp.eq.s32.totalorder %s21, 0
    %p277 = por %p275, %p276
    %p278 = scmp.ne.s32.totalorder %s270, %s272
    %p279 = scmp.eq.s32.totalorder %s26, 1
    %p280 = por %p278, %p279
    %p281 = scmp.ne.s32.totalorder %s272, %s273
    %p282 = scmp.eq.s32.totalorder %s26, 0
    %p283 = por %p281, %p282
    %p284 = scmp.ne.s32.totalorder %s272, %s273
    %p285 = scmp.eq.s32.totalorder %s27, 1
    %p286 = por %p284, %p285
    %p288 = scmp.ne.s32.totalorder %s273, %s287
    %p289 = scmp.eq.s32.totalorder %s27, 0
    %p290 = por %p288, %p289
    %s292 = sadd.s32 %s291, 1
    %p295 = scmp.eq.s32.totalorder %s21, 1
    %p296 = scmp.ne.s32.totalorder %s291, %s293
    %p297 = scmp.eq.s32.totalorder %s21, 0
    %p298 = por %p296, %p297
    %p299 = scmp.ne.s32.totalorder %s291, %s293
    %p300 = scmp.eq.s32.totalorder %s26, 1
    %p301 = por %p299, %p300
    %p302 = scmp.ne.s32.totalorder %s293, %s294
    %p303 = scmp.eq.s32.totalorder %s26, 0
    %p304 = por %p302, %p303
    %p305 = scmp.ne.s32.totalorder %s293, %s294
    %p306 = scmp.eq.s32.totalorder %s27, 1
    %p307 = por %p305, %p306
    %p309 = scmp.ne.s32.totalorder %s294, %s308
    %p310 = scmp.eq.s32.totalorder %s27, 0
    %p311 = por %p309, %p310
    %s312 = ssub.s32 %s21, %s28
    %p313 = scmp.eq.s32.totalorder %s312, 0
    %s315 = sadd.s32 %s314, 1
    %s316 = scalar_select %p313, %s314, %s315
    %p319 = pneg %p313
    %p320 = scmp.eq.s32.totalorder %s21, 1
    %p321 = por %p319, %p320
    %p322 = scmp.ne.s32.totalorder %s314, %s317
    %p323 = scmp.eq.s32.totalorder %s21, 0
    %p324 = por %p322, %p323
    %p325 = scmp.ne.s32.totalorder %s314, %s317
    %p326 = scmp.eq.s32.totalorder %s26, 1
    %p327 = por %p325, %p326
    %p328 = scmp.ne.s32.totalorder %s317, %s318
    %p329 = scmp.eq.s32.totalorder %s26, 0
    %p330 = por %p328, %p329
    %p331 = scmp.ne.s32.totalorder %s317, %s318
    %p332 = scmp.eq.s32.totalorder %s27, 1
    %p333 = por %p331, %p332
    %p335 = scmp.ne.s32.totalorder %s318, %s334
    %p336 = scmp.eq.s32.totalorder %s27, 0
    %p337 = por %p335, %p336
    %p338 = scmp.le.s32.totalorder 1, %s21
    %p339 = scmp.lt.s32.totalorder %s21, 3
    %p340 = pnand %p338, %p339
    %p341 = pneg %p340
    // Predicated region
    $region9: #{critic_forward.1} parent=5 // pred_check
      _
    $region10: #{critic_forward.1} parent=5 // pred_check_branch
      %343 = sbr.rel (%p340) target = $region12
    $region11: #{critic_forward.1} parent=5 // pred_region
      %s344 = ssub.s32 %s21, 1
      // Predicated region
      $region13: #{critic_forward.1} parent=11 // pred_check
        %p345 = pneg %p94
      $region14: #{critic_forward.1} parent=11 // pred_check_branch
        %347 = sbr.rel (%p345) target = $region16
      $region15: #{critic_forward.1} parent=11 // pred_region
        _
      $region16: #{critic_forward.1} parent=11 // pred_fallthru
        _
      // Predicated region
      $region17: #{critic_forward.1} parent=11 // pred_check
        %p348 = pneg %p115
      $region18: #{critic_forward.1} parent=11 // pred_check_branch
        %350 = sbr.rel (%p348) target = $region20
      $region19: #{critic_forward.1} parent=11 // pred_region
        _
      $region20: #{critic_forward.1} parent=11 // pred_fallthru
        _
      // Predicated region
      $region21: #{critic_forward.1} parent=11 // pred_check
        %p351 = pneg %p136
      $region22: #{critic_forward.1} parent=11 // pred_check_branch
        %353 = sbr.rel (%p351) target = $region24
      $region23: #{critic_forward.1} parent=11 // pred_region
        _
      $region24: #{critic_forward.1} parent=11 // pred_fallthru
        _
      // Predicated region
      $region25: #{critic_forward.1} parent=11 // pred_check
        %p354 = pneg %p157
      $region26: #{critic_forward.1} parent=11 // pred_check_branch
        %356 = sbr.rel (%p354) target = $region28
      $region27: #{critic_forward.1} parent=11 // pred_region
        _
      $region28: #{critic_forward.1} parent=11 // pred_fallthru
        _
      // Predicated region
      $region29: #{critic_forward.1} parent=11 // pred_check
        %p357 = pneg %p178
      $region30: #{critic_forward.1} parent=11 // pred_check_branch
        %359 = sbr.rel (%p357) target = $region32
      $region31: #{critic_forward.1} parent=11 // pred_region
        _
      $region32: #{critic_forward.1} parent=11 // pred_fallthru
        _
      // Predicated region
      $region33: #{critic_forward.1} parent=11 // pred_check
        %p360 = pneg %p199
      $region34: #{critic_forward.1} parent=11 // pred_check_branch
        %362 = sbr.rel (%p360) target = $region36
      $region35: #{critic_forward.1} parent=11 // pred_region
        _
      $region36: #{critic_forward.1} parent=11 // pred_fallthru
        _
      // Predicated region
      $region37: #{critic_forward.1} parent=11 // pred_check
        %p363 = pneg %p220
      $region38: #{critic_forward.1} parent=11 // pred_check_branch
        %365 = sbr.rel (%p363) target = $region40
      $region39: #{critic_forward.1} parent=11 // pred_region
        _
      $region40: #{critic_forward.1} parent=11 // pred_fallthru
        _
      // Predicated region
      $region41: #{critic_forward.1} parent=11 // pred_check
        %p366 = pneg %p241
      $region42: #{critic_forward.1} parent=11 // pred_check_branch
        %368 = sbr.rel (%p366) target = $region44
      $region43: #{critic_forward.1} parent=11 // pred_region
        _
      $region44: #{critic_forward.1} parent=11 // pred_fallthru
        _
      // Predicated region
      $region45: #{critic_forward.1} parent=11 // pred_check
        %p369 = pneg %p262
      $region46: #{critic_forward.1} parent=11 // pred_check_branch
        %371 = sbr.rel (%p369) target = $region48
      $region47: #{critic_forward.1} parent=11 // pred_region
        _
      $region48: #{critic_forward.1} parent=11 // pred_fallthru
        _
      // Predicated region
      $region49: #{critic_forward.1} parent=11 // pred_check
        %p372 = pneg %p283
      $region50: #{critic_forward.1} parent=11 // pred_check_branch
        %374 = sbr.rel (%p372) target = $region52
      $region51: #{critic_forward.1} parent=11 // pred_region
        _
      $region52: #{critic_forward.1} parent=11 // pred_fallthru
        _
      // Predicated region
      $region53: #{critic_forward.1} parent=11 // pred_check
        %p375 = pneg %p304
      $region54: #{critic_forward.1} parent=11 // pred_check_branch
        %377 = sbr.rel (%p375) target = $region56
      $region55: #{critic_forward.1} parent=11 // pred_region
        _
      $region56: #{critic_forward.1} parent=11 // pred_fallthru
        _
    $region12: #{critic_forward.1} parent=5 // pred_fallthru
      _
    %p378 = scmp.lt.s32.totalorder %s21, 2
    // Predicated region
    $region57: #{critic_forward.1} parent=5 // pred_check
      %p379 = pneg %p378
    $region58: #{critic_forward.1} parent=5 // pred_check_branch
      %381 = sbr.rel (%p379) target = $region60
    $region59: #{critic_forward.1} parent=5 // pred_region
      // Predicated region
      $region61: #{critic_forward.1} parent=59 // pred_check
        %p382 = pneg %p41
      $region62: #{critic_forward.1} parent=59 // pred_check_branch
        %384 = sbr.rel (%p382) target = $region64
      $region63: #{critic_forward.1} parent=59 // pred_region
        %s385 = smul.u32 4, %s21
        %p386 = scmp.lt.s32.totalorder %s385, 7
        %s387 = scalar_select %p386, %s385, 7
        %s388 = smul.addr %s387, 8
        %s389 = scalar_lea.vmem %s0, %s388
        %s390 = smul.u32 4, %s21
      $region64: #{critic_forward.1} parent=59 // pred_fallthru
        _
      // Predicated region
      $region65: #{critic_forward.1} parent=59 // pred_check
        %p391 = pneg %p67
      $region66: #{critic_forward.1} parent=59 // pred_check_branch
        %393 = sbr.rel (%p391) target = $region68
      $region67: #{critic_forward.1} parent=59 // pred_region
        %s394 = smul.u32 4, %s21
        %p395 = scmp.lt.s32.totalorder %s394, 7
        %s396 = scalar_select %p395, %s394, 7
        %s397 = smul.addr %s396, 8
        %s398 = scalar_lea.vmem %s1, %s397
        %s399 = smul.u32 4, %s21
      $region68: #{critic_forward.1} parent=59 // pred_fallthru
        _
    $region60: #{critic_forward.1} parent=5 // pred_fallthru
      _
    %p400 = scmp.le.s32.totalorder 1, %s21
    %p401 = scmp.lt.s32.totalorder %s21, 3
    %p402 = pnand %p400, %p401
    %p403 = pneg %p402
    // Predicated region
    $region69: #{critic_forward.1} parent=5 // pred_check
      _
    $region70: #{critic_forward.1} parent=5 // pred_check_branch
      %405 = sbr.rel (%p402) target = $region72
    $region71: #{critic_forward.1} parent=5 // pred_region
      %s406 = ssub.s32 %s21, 1
      %s407 = smul.u32 4, %s26
      %p408 = scmp.lt.s32.totalorder %s407, 7
      %s409 = scalar_select %p408, %s407, 7
      %s410 = smul.addr %s409, 8
      %s411 = scalar_lea.vmem %s0, %s410
      %p412 = pneg %p47
      %p413 = pneg %p44
      %s414 = smul.u32 4, %s26
      %p415 = scmp.lt.s32.totalorder %s414, 7
      %s416 = scalar_select %p415, %s414, 7
      %s417 = smul.addr %s416, 8
      %s418 = scalar_lea.vmem %s1, %s417
      %p419 = pneg %p73
      %p420 = pneg %p70
      %p421 = pneg %p94
      %p422 = pneg %p91
      %p423 = pneg %p115
      %p424 = pneg %p112
      %p425 = pneg %p136
      %p426 = pneg %p133
      %p427 = pneg %p157
      %p428 = pneg %p154
      %p429 = pneg %p178
      %p430 = pneg %p175
      %p431 = pneg %p199
      %p432 = pneg %p196
      %p433 = pneg %p220
      %p434 = pneg %p217
      %p435 = pneg %p241
      %p436 = pneg %p238
      %p437 = pneg %p262
      %p438 = pneg %p259
      %p439 = pneg %p283
      %p440 = pneg %p280
      %p441 = pneg %p304
      %p442 = pneg %p301
      %p443 = pneg %p330
      %p444 = pneg %p327
      %s445 = smul.u32 4, %s26
      %p446 = scmp.lt.s32.totalorder %s445, 7
      %s447 = scalar_select %p446, %s445, 7
      %s448 = smul.addr %s447, 8
      %s449 = scalar_lea.vmem %s13, %s448
      %s450 = smul.u32 4, %s26
      %p451 = scmp.lt.s32.totalorder %s450, 7
      %s452 = scalar_select %p451, %s450, 7
      %s453 = smul.addr %s452, 8
      %s454 = scalar_lea.vmem %s0, %s453
      %s455 = smul.u32 4, %s26
      %s456 = smul.u32 4, %s26
      %p457 = scmp.lt.s32.totalorder %s456, 7
      %s458 = scalar_select %p457, %s456, 7
      %s459 = smul.addr %s458, 8
      %s460 = scalar_lea.vmem %s1, %s459
      %s461 = smul.u32 4, %s26
      %s462 = smul.u32 4, %s26
      %p463 = scmp.lt.s32.totalorder %s462, 7
      %s464 = scalar_select %p463, %s462, 7
      %s465 = smul.addr %s464, 8
      %s466 = scalar_lea.vmem %s13, %s465
      %s467 = smul.u32 4, %s26
      %v468 = vld [vmem:[%s454] sm:$0xff]
      %v469 = vld [vmem:[%s454 + $0x8] sm:$0xff]
      %v470 = vld [vmem:[%s454 + $0x10] sm:$0xff]
      %v471 = vld [vmem:[%s454 + $0x18] sm:$0xff]
      %v472 = vld [vmem:[%s460] sm:$0xff]
      %v473 = vld [vmem:[%s460 + $0x8] sm:$0xff]
      %v474 = vld [vmem:[%s460 + $0x10] sm:$0xff]
      %v475 = vld [vmem:[%s460 + $0x18] sm:$0xff]
      %v476 = vld [vmem:[%s2] sm:$0xff]
      %v477 = vld [vmem:[%s2 + $0x8] sm:$0xff]
      %v478 = vld [vmem:[%s3] sm:$0x1]
      %v480 = vlaneseq
      %v481 = vshrl.u32 %v480, 7
      %v482 = vsub.s32 0, %v481
      %v483 = vrot.slane %v478, %v482
      %vm485 = vcmask 130048
      %v487 = vsel %vm485, %v468, 0
      %v490 = vsel %vm485, %v469, 0
      %v493 = vsel %vm485, %v470, 0
      %v496 = vsel %vm485, %v471, 0
      %498 = vmatprep.subr.mxu0 0.0
      %499 = vmatpush1.msra.mxu0 %v476
      %500 = vmatprep.subr.mxu0 0.0
      %501 = vmatpush1.msra.mxu0 %v477
      %502 = vmatprep.subr.mxu0 0.0
      %503 = vmatpush1.msra.mxu0 0.0
      %504 = vmatprep.subr.mxu0 0.0
      %505 = vmatpush1.msra.mxu0 0.0
      %506 = vmatprep.subr.mxu0 0.0
      %507 = vmatpush1.msra.mxu0 0.0
      %508 = vmatprep.subr.mxu0 0.0
      %509 = vmatpush1.msra.mxu0 0.0
      %510 = vmatprep.subr.mxu0 0.0
      %511 = vmatpush1.msra.mxu0 0.0
      %512 = vmatprep.subr.mxu0 0.0
      %513 = vmatpush1.msra.mxu0 0.0
      %514 = vmatprep.subr.mxu0 0.0
      %515 = vmatpush1.msra.mxu0 0.0
      %516 = vmatprep.subr.mxu0 0.0
      %517 = vmatpush1.msra.mxu0 0.0
      %518 = vmatprep.subr.mxu0 0.0
      %519 = vmatpush1.msra.mxu0 0.0
      %520 = vmatprep.subr.mxu0 0.0
      %521 = vmatpush1.msra.mxu0 0.0
      %522 = vmatprep.subr.mxu0 0.0
      %523 = vmatpush1.msra.mxu0 0.0
      %524 = vmatprep.subr.mxu0 0.0
      %525 = vmatpush1.msra.mxu0 0.0
      %526 = vmatprep.subr.mxu0 0.0
      %527 = vmatpush1.msra.mxu0 0.0
      %528 = vmatprep.subr.mxu0 0.0
      %529 = vmatpush1.msra.mxu0 0.0
      %530 = vmatprep.subr.mxu0 0.0
      %531 = vmatpush1.msra.mxu0 0.0
      %532 = vmatprep.subr.mxu0 0.0
      %533 = vmatpush1.msra.mxu0 0.0
      %534 = vmatprep.subr.mxu0 0.0
      %535 = vmatpush1.msra.mxu0 0.0
      %536 = vmatprep.subr.mxu0 0.0
      %537 = vmatpush1.msra.mxu0 0.0
      %538 = vmatprep.subr.mxu0 0.0
      %539 = vmatpush1.msra.mxu0 0.0
      %540 = vmatprep.subr.mxu0 0.0
      %541 = vmatpush1.msra.mxu0 0.0
      %542 = vmatprep.subr.mxu0 0.0
      %543 = vmatpush1.msra.mxu0 0.0
      %544 = vmatprep.subr.mxu0 0.0
      %545 = vmatpush1.msra.mxu0 0.0
      %546 = vmatprep.subr.mxu0 0.0
      %547 = vmatpush1.msra.mxu0 0.0
      %548 = vmatprep.subr.mxu0 0.0
      %549 = vmatpush1.msra.mxu0 0.0
      %550 = vmatprep.subr.mxu0 0.0
      %551 = vmatpush1.msra.mxu0 0.0
      %552 = vmatprep.subr.mxu0 0.0
      %553 = vmatpush1.msra.mxu0 0.0
      %554 = vmatprep.subr.mxu0 0.0
      %555 = vmatpush1.msra.mxu0 0.0
      %556 = vmatprep.subr.mxu0 0.0
      %557 = vmatpush1.msra.mxu0 0.0
      %558 = vmatprep.subr.mxu0 0.0
      %559 = vmatpush1.msra.mxu0 0.0
      %560 = vmatprep.subr.mxu0 0.0
      %561 = vmatpush1.msra.mxu0 0.0
      %562 = vmatprep.mubr.f32.mxu0 0.0
      %563 = vmatmul.mubr.f32.gmra.mrb[0].mxu0 %v487
      %v564 = vpop.f32.mrb[0].mxu0
      %v565 = vadd.f32 %v483, %v564
      %v566 = vpop.f32.mrb[0].mxu0
      %567 = vmatprep.mubr.f32.mxu0 0.0
      %568 = vmatmul.mubr.f32.gmra.mrb[0].mxu0 %v490
      %v569 = vpop.f32.mrb[0].mxu0
      %v570 = vadd.f32 %v483, %v569
      %v571 = vpop.f32.mrb[0].mxu0
      %572 = vmatprep.mubr.f32.mxu0 0.0
      %573 = vmatmul.mubr.f32.gmra.mrb[0].mxu0 %v493
      %v574 = vpop.f32.mrb[0].mxu0
      %v575 = vadd.f32 %v483, %v574
      %v576 = vpop.f32.mrb[0].mxu0
      %577 = vmatprep.mubr.f32.mxu0 0.0
      %578 = vmatmul.mubr.f32.gmra.mrb[0].mxu0 %v496
      %v579 = vpop.f32.mrb[0].mxu0
      %v580 = vadd.f32 %v483, %v579
      %v581 = vpop.f32.mrb[0].mxu0
      %582 = vdwg.mxu0
      %v583 = vld [vmem:[%s4] sm:$0x1]
      %v584 = vld [vmem:[%s5] sm:$0x1]
      %vm585 = vcmask 523264
      %v586 = vsel %vm585, %v565, 0.0
      %587 = vadd.xlane.f32.xlu0 %v586
      %v588 = vpop.xlane.xlu0 %587
      %v589 = vsel %vm585, %v570, 0.0
      %590 = vadd.xlane.f32.xlu0 %v589
      %v591 = vpop.xlane.xlu0 %590
      %v592 = vsel %vm585, %v575, 0.0
      %593 = vadd.xlane.f32.xlu0 %v592
      %v594 = vpop.xlane.xlu0 %593
      %v595 = vsel %vm585, %v580, 0.0
      %596 = vadd.xlane.f32.xlu0 %v595
      %v597 = vpop.xlane.xlu0 %596
      %v598 = vrcp.pop 64.0
      %v599 = vmul.f32 %v588, %v598
      %v600 = vmul.f32 %v591, %v598
      %v601 = vmul.f32 %v594, %v598
      %v602 = vmul.f32 %v597, %v598
      %v603 = vmul.f32 %v565, %v565
      %v604 = vmul.f32 %v570, %v570
      %v605 = vmul.f32 %v575, %v575
      %v606 = vmul.f32 %v580, %v580
      %v607 = vsel %vm585, %v603, 0.0
      %608 = vadd.xlane.f32.xlu0 %v607
      %v609 = vpop.xlane.xlu0 %608
      %v610 = vsel %vm585, %v604, 0.0
      %611 = vadd.xlane.f32.xlu0 %v610
      %v612 = vpop.xlane.xlu0 %611
      %v613 = vsel %vm585, %v605, 0.0
      %614 = vadd.xlane.f32.xlu0 %v613
      %v615 = vpop.xlane.xlu0 %614
      %v616 = vsel %vm585, %v606, 0.0
      %617 = vadd.xlane.f32.xlu0 %v616
      %v618 = vpop.xlane.xlu0 %617
      %v619 = vmul.f32 %v609, %v598
      %v620 = vmul.f32 %v612, %v598
      %v621 = vmul.f32 %v615, %v598
      %v622 = vmul.f32 %v618, %v598
      %v623 = vmul.f32 %v599, %v599
      %v624 = vmul.f32 %v600, %v600
      %v625 = vmul.f32 %v601, %v601
      %v626 = vmul.f32 %v602, %v602
      %v627 = vsub.f32 %v619, %v623
      %v628 = vsub.f32 %v620, %v624
      %v629 = vsub.f32 %v621, %v625
      %v630 = vsub.f32 %v622, %v626
      %v631 = vmax.f32 %v627, 0.0
      %v632 = vmax.f32 %v628, 0.0
      %v633 = vmax.f32 %v629, 0.0
      %v634 = vmax.f32 %v630, 0.0
      %v635 = vsub.f32 %v565, %v599
      %v636 = vsub.f32 %v570, %v600
      %v637 = vsub.f32 %v575, %v601
      %v638 = vsub.f32 %v580, %v602
      %v639 = vadd.f32 %v631, 1e-05
      %v640 = vadd.f32 %v632, 1e-05
      %v641 = vadd.f32 %v633, 1e-05
      %v642 = vadd.f32 %v634, 1e-05
      %v643 = vrsqrt.pop %v639
      %v644 = vrsqrt.pop %v640
      %v645 = vrsqrt.pop %v641
      %v646 = vrsqrt.pop %v642
      %v647 = vmul.f32 %v635, %v643
      %v648 = vmul.f32 %v636, %v644
      %v649 = vmul.f32 %v637, %v645
      %v650 = vmul.f32 %v638, %v646
      %v652 = vlaneseq
      %v653 = vshrl.u32 %v652, 7
      %v654 = vsub.s32 0, %v653
      %v655 = vrot.slane %v583, %v654
      %v657 = vmul.f32 %v647, %v655
      %v658 = vmul.f32 %v648, %v655
      %v659 = vmul.f32 %v649, %v655
      %v660 = vmul.f32 %v650, %v655
      %v662 = vlaneseq
      %v663 = vshrl.u32 %v662, 7
      %v664 = vsub.s32 0, %v663
      %v665 = vrot.slane %v584, %v664
      %v667 = vadd.f32 %v657, %v665
      %v668 = vadd.f32 %v658, %v665
      %v669 = vadd.f32 %v659, %v665
      %v670 = vadd.f32 %v660, %v665
      %v671 = vmax.f32 %v667, 0.0
      %v672 = vmax.f32 %v668, 0.0
      %v673 = vmax.f32 %v669, 0.0
      %v674 = vmax.f32 %v670, 0.0
      %v675 = vld [vmem:[%s6] sm:$0xff]
      %v676 = vld [vmem:[%s6 + $0x8] sm:$0xff]
      %v677 = vld [vmem:[%s6 + $0x10] sm:$0xff]
      %v678 = vld [vmem:[%s6 + $0x18] sm:$0xff]
      %v679 = vld [vmem:[%s6 + $0x20] sm:$0xff]
      %v680 = vld [vmem:[%s6 + $0x28] sm:$0xff]
      %v681 = vld [vmem:[%s6 + $0x30] sm:$0xff]
      %v682 = vld [vmem:[%s6 + $0x38] sm:$0xff]
      %v683 = vld [vmem:[%s8] sm:$0x1]
      %v685 = vlaneseq
      %v686 = vshrl.u32 %v685, 7
      %v687 = vsub.s32 0, %v686
      %v688 = vrot.slane %v683, %v687
      %v691 = vsel %vm585, %v671, 0
      %v694 = vsel %vm585, %v672, 0
      %v697 = vsel %vm585, %v673, 0
      %v700 = vsel %vm585, %v674, 0
      %702 = vmatprep.subr.mxu0 0.0
      %703 = vmatpush1.msra.mxu0 %v675
      %704 = vmatprep.subr.mxu0 0.0
      %705 = vmatpush1.msra.mxu0 %v676
      %706 = vmatprep.subr.mxu0 0.0
      %707 = vmatpush1.msra.mxu0 %v677
      %708 = vmatprep.subr.mxu0 0.0
      %709 = vmatpush1.msra.mxu0 %v678
      %710 = vmatprep.subr.mxu0 0.0
      %711 = vmatpush1.msra.mxu0 %v679
      %712 = vmatprep.subr.mxu0 0.0
      %713 = vmatpush1.msra.mxu0 %v680
      %714 = vmatprep.subr.mxu0 0.0
      %715 = vmatpush1.msra.mxu0 %v681
      %716 = vmatprep.subr.mxu0 0.0
      %717 = vmatpush1.msra.mxu0 %v682
      %718 = vmatprep.subr.mxu0 0.0
      %719 = vmatpush1.msra.mxu0 0.0
      %720 = vmatprep.subr.mxu0 0.0
      %721 = vmatpush1.msra.mxu0 0.0
      %722 = vmatprep.subr.mxu0 0.0
      %723 = vmatpush1.msra.mxu0 0.0
      %724 = vmatprep.subr.mxu0 0.0
      %725 = vmatpush1.msra.mxu0 0.0
      %726 = vmatprep.subr.mxu0 0.0
      %727 = vmatpush1.msra.mxu0 0.0
      %728 = vmatprep.subr.mxu0 0.0
      %729 = vmatpush1.msra.mxu0 0.0
      %730 = vmatprep.subr.mxu0 0.0
      %731 = vmatpush1.msra.mxu0 0.0
      %732 = vmatprep.subr.mxu0 0.0
      %733 = vmatpush1.msra.mxu0 0.0
      %734 = vmatprep.subr.mxu0 0.0
      %735 = vmatpush1.msra.mxu0 0.0
      %736 = vmatprep.subr.mxu0 0.0
      %737 = vmatpush1.msra.mxu0 0.0
      %738 = vmatprep.subr.mxu0 0.0
      %739 = vmatpush1.msra.mxu0 0.0
      %740 = vmatprep.subr.mxu0 0.0
      %741 = vmatpush1.msra.mxu0 0.0
      %742 = vmatprep.subr.mxu0 0.0
      %743 = vmatpush1.msra.mxu0 0.0
      %744 = vmatprep.subr.mxu0 0.0
      %745 = vmatpush1.msra.mxu0 0.0
      %746 = vmatprep.subr.mxu0 0.0
      %747 = vmatpush1.msra.mxu0 0.0
      %748 = vmatprep.subr.mxu0 0.0
      %749 = vmatpush1.msra.mxu0 0.0
      %750 = vmatprep.subr.mxu0 0.0
      %751 = vmatpush1.msra.mxu0 0.0
      %752 = vmatprep.subr.mxu0 0.0
      %753 = vmatpush1.msra.mxu0 0.0
      %754 = vmatprep.subr.mxu0 0.0
      %755 = vmatpush1.msra.mxu0 0.0
      %756 = vmatprep.subr.mxu0 0.0
      %757 = vmatpush1.msra.mxu0 0.0
      %758 = vmatprep.subr.mxu0 0.0
      %759 = vmatpush1.msra.mxu0 0.0
      %760 = vmatprep.subr.mxu0 0.0
      %761 = vmatpush1.msra.mxu0 0.0
      %762 = vmatprep.subr.mxu0 0.0
      %763 = vmatpush1.msra.mxu0 0.0
      %764 = vmatprep.subr.mxu0 0.0
      %765 = vmatpush1.msra.mxu0 0.0
      %766 = vmatprep.mubr.f32.mxu0 0.0
      %767 = vmatmul.mubr.f32.gmra.mrb[0].mxu0 %v691
      %v768 = vpop.f32.mrb[0].mxu0
      %v769 = vadd.f32 %v688, %v768
      %v770 = vpop.f32.mrb[0].mxu0
      %771 = vmatprep.mubr.f32.mxu0 0.0
      %772 = vmatmul.mubr.f32.gmra.mrb[0].mxu0 %v694
      %v773 = vpop.f32.mrb[0].mxu0
      %v774 = vadd.f32 %v688, %v773
      %v775 = vpop.f32.mrb[0].mxu0
      %776 = vmatprep.mubr.f32.mxu0 0.0
      %777 = vmatmul.mubr.f32.gmra.mrb[0].mxu0 %v697
      %v778 = vpop.f32.mrb[0].mxu0
      %v779 = vadd.f32 %v688, %v778
      %v780 = vpop.f32.mrb[0].mxu0
      %781 = vmatprep.mubr.f32.mxu0 0.0
      %782 = vmatmul.mubr.f32.gmra.mrb[0].mxu0 %v700
      %v783 = vpop.f32.mrb[0].mxu0
      %v784 = vadd.f32 %v688, %v783
      %v785 = vpop.f32.mrb[0].mxu0
      %786 = vdwg.mxu0
      %v787 = vld [vmem:[%s7] sm:$0x1]
      %789 = vset.pattern.permute.xlu0 0
      %790 = vperm.xlu0 %789, %v472
      %v791 = vpop.permute.xlu0 %790
      %794 = vset.pattern.permute.xlu0 0
      %795 = vperm.xlu0 %794, %v473
      %v796 = vpop.permute.xlu0 %795
      %799 = vset.pattern.permute.xlu0 0
      %800 = vperm.xlu0 %799, %v474
      %v801 = vpop.permute.xlu0 %800
      %804 = vset.pattern.permute.xlu0 0
      %805 = vperm.xlu0 %804, %v475
      %v806 = vpop.permute.xlu0 %805
      %v808 = vlaneseq
      %v809 = vshrl.u32 %v808, 7
      %v810 = vsub.s32 0, %v809
      %v811 = vrot.slane %v787, %v810
      %v812 = vmul.f32 %v791, %v811
      %v813 = vmul.f32 %v796, %v811
      %v814 = vmul.f32 %v801, %v811
      %v815 = vmul.f32 %v806, %v811
      %v816 = vadd.f32 %v769, %v812
      %v817 = vadd.f32 %v774, %v813
      %v818 = vadd.f32 %v779, %v814
      %v819 = vadd.f32 %v784, %v815
      %v820 = vld [vmem:[%s7 + $0x1] sm:$0x1]
      %821 = vset.pattern.permute.xlu0 1
      %822 = vperm.xlu0 %821, %v472
      %v823 = vpop.permute.xlu0 %822
      %825 = vset.pattern.permute.xlu0 1
      %826 = vperm.xlu0 %825, %v473
      %v827 = vpop.permute.xlu0 %826
      %829 = vset.pattern.permute.xlu0 1
      %830 = vperm.xlu0 %829, %v474
      %v831 = vpop.permute.xlu0 %830
      %833 = vset.pattern.permute.xlu0 1
      %834 = vperm.xlu0 %833, %v475
      %v835 = vpop.permute.xlu0 %834
      %v837 = vlaneseq
      %v838 = vshrl.u32 %v837, 7
      %v839 = vsub.s32 0, %v838
      %v840 = vrot.slane %v820, %v839
      %v841 = vmul.f32 %v823, %v840
      %v842 = vmul.f32 %v827, %v840
      %v843 = vmul.f32 %v831, %v840
      %v844 = vmul.f32 %v835, %v840
      %v845 = vadd.f32 %v816, %v841
      %v846 = vadd.f32 %v817, %v842
      %v847 = vadd.f32 %v818, %v843
      %v848 = vadd.f32 %v819, %v844
      %v849 = vld [vmem:[%s7 + $0x2] sm:$0x1]
      %850 = vset.pattern.permute.xlu0 2
      %851 = vperm.xlu0 %850, %v472
      %v852 = vpop.permute.xlu0 %851
      %854 = vset.pattern.permute.xlu0 2
      %855 = vperm.xlu0 %854, %v473
      %v856 = vpop.permute.xlu0 %855
      %858 = vset.pattern.permute.xlu0 2
      %859 = vperm.xlu0 %858, %v474
      %v860 = vpop.permute.xlu0 %859
      %862 = vset.pattern.permute.xlu0 2
      %863 = vperm.xlu0 %862, %v475
      %v864 = vpop.permute.xlu0 %863
      %v866 = vlaneseq
      %v867 = vshrl.u32 %v866, 7
      %v868 = vsub.s32 0, %v867
      %v869 = vrot.slane %v849, %v868
      %v870 = vmul.f32 %v852, %v869
      %v871 = vmul.f32 %v856, %v869
      %v872 = vmul.f32 %v860, %v869
      %v873 = vmul.f32 %v864, %v869
      %v874 = vadd.f32 %v845, %v870
      %v875 = vadd.f32 %v846, %v871
      %v876 = vadd.f32 %v847, %v872
      %v877 = vadd.f32 %v848, %v873
      %v878 = vld [vmem:[%s7 + $0x3] sm:$0x1]
      %879 = vset.pattern.permute.xlu0 3
      %880 = vperm.xlu0 %879, %v472
      %v881 = vpop.permute.xlu0 %880
      %883 = vset.pattern.permute.xlu0 3
      %884 = vperm.xlu0 %883, %v473
      %v885 = vpop.permute.xlu0 %884
      %887 = vset.pattern.permute.xlu0 3
      %888 = vperm.xlu0 %887, %v474
      %v889 = vpop.permute.xlu0 %888
      %891 = vset.pattern.permute.xlu0 3
      %892 = vperm.xlu0 %891, %v475
      %v893 = vpop.permute.xlu0 %892
      %v895 = vlaneseq
      %v896 = vshrl.u32 %v895, 7
      %v897 = vsub.s32 0, %v896
      %v898 = vrot.slane %v878, %v897
      %v899 = vmul.f32 %v881, %v898
      %v900 = vmul.f32 %v885, %v898
      %v901 = vmul.f32 %v889, %v898
      %v902 = vmul.f32 %v893, %v898
      %v903 = vadd.f32 %v874, %v899
      %v904 = vadd.f32 %v875, %v900
      %v905 = vadd.f32 %v876, %v901
      %v906 = vadd.f32 %v877, %v902
      %v907 = vld [vmem:[%s9] sm:$0x1]
      %v908 = vld [vmem:[%s10] sm:$0x1]
      %vm909 = vcmask 261120
      %v910 = vsel %vm909, %v903, 0.0
      %911 = vadd.xlane.f32.xlu0 %v910
      %v912 = vpop.xlane.xlu0 %911
      %v913 = vsel %vm909, %v904, 0.0
      %914 = vadd.xlane.f32.xlu0 %v913
      %v915 = vpop.xlane.xlu0 %914
      %v916 = vsel %vm909, %v905, 0.0
      %917 = vadd.xlane.f32.xlu0 %v916
      %v918 = vpop.xlane.xlu0 %917
      %v919 = vsel %vm909, %v906, 0.0
      %920 = vadd.xlane.f32.xlu0 %v919
      %v921 = vpop.xlane.xlu0 %920
      %v922 = vrcp.pop 32.0
      %v923 = vmul.f32 %v912, %v922
      %v924 = vmul.f32 %v915, %v922
      %v925 = vmul.f32 %v918, %v922
      %v926 = vmul.f32 %v921, %v922
      %v927 = vmul.f32 %v903, %v903
      %v928 = vmul.f32 %v904, %v904
      %v929 = vmul.f32 %v905, %v905
      %v930 = vmul.f32 %v906, %v906
      %v931 = vsel %vm909, %v927, 0.0
      %932 = vadd.xlane.f32.xlu0 %v931
      %v933 = vpop.xlane.xlu0 %932
      %v934 = vsel %vm909, %v928, 0.0
      %935 = vadd.xlane.f32.xlu0 %v934
      %v936 = vpop.xlane.xlu0 %935
      %v937 = vsel %vm909, %v929, 0.0
      %938 = vadd.xlane.f32.xlu0 %v937
      %v939 = vpop.xlane.xlu0 %938
      %v940 = vsel %vm909, %v930, 0.0
      %941 = vadd.xlane.f32.xlu0 %v940
      %v942 = vpop.xlane.xlu0 %941
      %v943 = vmul.f32 %v933, %v922
      %v944 = vmul.f32 %v936, %v922
      %v945 = vmul.f32 %v939, %v922
      %v946 = vmul.f32 %v942, %v922
      %v947 = vmul.f32 %v923, %v923
      %v948 = vmul.f32 %v924, %v924
      %v949 = vmul.f32 %v925, %v925
      %v950 = vmul.f32 %v926, %v926
      %v951 = vsub.f32 %v943, %v947
      %v952 = vsub.f32 %v944, %v948
      %v953 = vsub.f32 %v945, %v949
      %v954 = vsub.f32 %v946, %v950
      %v955 = vmax.f32 %v951, 0.0
      %v956 = vmax.f32 %v952, 0.0
      %v957 = vmax.f32 %v953, 0.0
      %v958 = vmax.f32 %v954, 0.0
      %v959 = vsub.f32 %v903, %v923
      %v960 = vsub.f32 %v904, %v924
      %v961 = vsub.f32 %v905, %v925
      %v962 = vsub.f32 %v906, %v926
      %v963 = vadd.f32 %v955, 1e-05
      %v964 = vadd.f32 %v956, 1e-05
      %v965 = vadd.f32 %v957, 1e-05
      %v966 = vadd.f32 %v958, 1e-05
      %v967 = vrsqrt.pop %v963
      %v968 = vrsqrt.pop %v964
      %v969 = vrsqrt.pop %v965
      %v970 = vrsqrt.pop %v966
      %v971 = vmul.f32 %v959, %v967
      %v972 = vmul.f32 %v960, %v968
      %v973 = vmul.f32 %v961, %v969
      %v974 = vmul.f32 %v962, %v970
      %v976 = vlaneseq
      %v977 = vshrl.u32 %v976, 7
      %v978 = vsub.s32 0, %v977
      %v979 = vrot.slane %v907, %v978
      %v981 = vmul.f32 %v971, %v979
      %v982 = vmul.f32 %v972, %v979
      %v983 = vmul.f32 %v973, %v979
      %v984 = vmul.f32 %v974, %v979
      %v986 = vlaneseq
      %v987 = vshrl.u32 %v986, 7
      %v988 = vsub.s32 0, %v987
      %v989 = vrot.slane %v908, %v988
      %v991 = vadd.f32 %v981, %v989
      %v992 = vadd.f32 %v982, %v989
      %v993 = vadd.f32 %v983, %v989
      %v994 = vadd.f32 %v984, %v989
      %v995 = vmax.f32 %v991, 0.0
      %v996 = vmax.f32 %v992, 0.0
      %v997 = vmax.f32 %v993, 0.0
      %v998 = vmax.f32 %v994, 0.0
      %v999 = vld [vmem:[%s11] sm:$0x1]
      %v1001 = vlaneseq
      %v1002 = vshrl.u32 %v1001, 7
      %v1003 = vsub.s32 0, %v1002
      %v1004 = vrot.slane %v999, %v1003
      %v1006 = vmul.f32 %v995, %v1004
      %v1007 = vmul.f32 %v996, %v1004
      %v1008 = vmul.f32 %v997, %v1004
      %v1009 = vmul.f32 %v998, %v1004
      %v1010 = vsel %vm909, %v1006, 0.0
      %1011 = vadd.xlane.f32.xlu0 %v1010
      %v1012 = vpop.xlane.xlu0 %1011
      %v1013 = vsel %vm909, %v1007, 0.0
      %1014 = vadd.xlane.f32.xlu0 %v1013
      %v1015 = vpop.xlane.xlu0 %1014
      %v1016 = vsel %vm909, %v1008, 0.0
      %1017 = vadd.xlane.f32.xlu0 %v1016
      %v1018 = vpop.xlane.xlu0 %1017
      %v1019 = vsel %vm909, %v1009, 0.0
      %1020 = vadd.xlane.f32.xlu0 %v1019
      %v1021 = vpop.xlane.xlu0 %1020
      %v1022 = vld [vmem:[#allocation2] sm:$0x1]
      %v1024 = vlaneseq
      %v1025 = vshrl.u32 %v1024, 7
      %v1026 = vsub.s32 0, %v1025
      %v1027 = vrot.slane %v1022, %v1026
      %v1029 = vadd.f32 %v1012, %v1027
      %v1030 = vadd.f32 %v1015, %v1027
      %v1031 = vadd.f32 %v1018, %v1027
      %v1032 = vadd.f32 %v1021, %v1027
      %1034 = vset.pattern.permute.xlu0 0
      %1035 = vperm.xlu0 %1034, %v1029
      %v1036 = vpop.permute.xlu0 %1035
      %1039 = vset.pattern.permute.xlu0 0
      %1040 = vperm.xlu0 %1039, %v1030
      %v1041 = vpop.permute.xlu0 %1040
      %1044 = vset.pattern.permute.xlu0 0
      %1045 = vperm.xlu0 %1044, %v1031
      %v1046 = vpop.permute.xlu0 %1045
      %1049 = vset.pattern.permute.xlu0 0
      %1050 = vperm.xlu0 %1049, %v1032
      %v1051 = vpop.permute.xlu0 %1050
      %1053 = vst [vmem:[%s466] sm:$0xff] %v1036
      %1054 = vst [vmem:[%s466 + $0x8] sm:$0xff] %v1041
      %1055 = vst [vmem:[%s466 + $0x10] sm:$0xff] %v1046
      %1056 = vst [vmem:[%s466 + $0x18] sm:$0xff] %v1051
      %s1057 = smul.u32 4, %s26
      %p1058 = scmp.lt.s32.totalorder %s1057, 7
      %s1059 = scalar_select %p1058, %s1057, 7
      %s1060 = smul.addr %s1059, 8
      %s1061 = scalar_lea.vmem %s13, %s1060
      // Predicated region
      $region73: #{critic_forward.1} parent=71 // pred_check
        %p1062 = pneg %p327
      $region74: #{critic_forward.1} parent=71 // pred_check_branch
        %1064 = sbr.rel (%p1062) target = $region76
      $region75: #{critic_forward.1} parent=71 // pred_region
        %s1065 = smul.u32 4, %s26
      $region76: #{critic_forward.1} parent=71 // pred_fallthru
        _
    $region72: #{critic_forward.1} parent=5 // pred_fallthru
      _
    %p1066 = scmp.le.s32.totalorder 2, %s21
    // Predicated region
    $region77: #{critic_forward.1} parent=5 // pred_check
      %p1067 = pneg %p1066
    $region78: #{critic_forward.1} parent=5 // pred_check_branch
      %1069 = sbr.rel (%p1067) target = $region80
    $region79: #{critic_forward.1} parent=5 // pred_region
      %s1070 = ssub.s32 %s21, 2
      // Predicated region
      $region81: #{critic_forward.1} parent=79 // pred_check
        %p1071 = pneg %p333
      $region82: #{critic_forward.1} parent=79 // pred_check_branch
        %1073 = sbr.rel (%p1071) target = $region84
      $region83: #{critic_forward.1} parent=79 // pred_region
        %s1074 = smul.u32 4, %s27
        %p1075 = scmp.lt.s32.totalorder %s1074, 7
        %s1076 = scalar_select %p1075, %s1074, 7
        %s1077 = smul.addr %s1076, 8
        %s1078 = scalar_lea.vmem %s13, %s1077
      $region84: #{critic_forward.1} parent=79 // pred_fallthru
        _
    $region80: #{critic_forward.1} parent=5 // pred_fallthru
      _
  $region6: #{critic_forward.1} parent=0 // loop_footer
    %s25 = sadd.s32 1, %s21
  $region7: #{critic_forward.1} parent=0 // loop_footer_branch
    %20 = sbr.rel target = $region3
  $region8: #{critic_forward.1} parent=0 // loop_exit
    _

</llo_original>
